<compile_context>
chip_gen: v6e
topology: v6e:2x2x1
jax: 0.10.0
libtpu: 0.0.40
codegen_flags: <defaults>
</compile_context>

<pallas_src>
import jax
import jax.numpy as jnp
from jax.experimental import pallas as pl
from jax.experimental.pallas import tpu as pltpu


def _make_kernel(Nb, C, Cout, H, W, K, P):
    L = H * W

    def shift_lanes(v, s):
        # out[..., i] = v[..., i + s], zero-filled outside [0, L).  s is static.
        if s == 0:
            return v
        zeros = jnp.zeros(v.shape[:-1] + (abs(s),), v.dtype)
        if s > 0:
            return jnp.concatenate([v[..., s:], zeros], axis=-1)
        return jnp.concatenate([zeros, v[..., :s]], axis=-1)

    def kernel(x_ref, dwb_ref, pwb_ref, bias_ref, o_ref):
        # x_ref   : (Nb, C, L)       input images, H*W flattened onto lanes
        # dwb_ref : (K*K, C, L) f32  depthwise weights, lane-broadcast, with the
        #                            horizontal zero-pad (row-wrap) mask folded in
        # pwb_ref : (C, Cout, L) f32 pointwise weights, lane-broadcast
        # bias_ref: (Cout, L)   f32  bias, lane-broadcast
        # o_ref   : (Nb, Cout, L)
        for n in range(Nb):
            x = x_ref[n].astype(jnp.float32)                    # (C, L)

            # Vertical taps: 4 whole-row shifts (zero fill == vertical zero padding),
            # hoisted out of the kw loop and shared by all 5 columns.
            xh = [shift_lanes(x, dh * W) for dh in range(-P, P + 1)]

            # Depthwise 5x5: per column kw, weighted sum over kh (per-channel weight
            # planes from VMEM), then one column shift.  Horizontal padding is
            # already folded into dwb, so no masks are built in-kernel.
            dw_out = None
            for kw in range(K):
                col = None
                for kh in range(K):
                    term = xh[kh] * dwb_ref[kh * K + kw]        # (C, L)
                    col = term if col is None else col + term
                col = shift_lanes(col, kw - P)
                dw_out = col if dw_out is None else dw_out + col

            # Pointwise 1x1 + bias + ReLU: VPU broadcast-MAC over C (C, Cout tiny).
            # TODO(synk): for production C, Cout >= 128 run this stage on the MXU:
            #   y = jnp.dot(pw, dw_out, preferred_element_type=jnp.float32)
            y = bias_ref[...]                                   # (Cout, L)
            for c in range(C):
                y = y + pwb_ref[c] * dw_out[c]
            o_ref[n] = jnp.maximum(y, 0.0).astype(o_ref.dtype)  # full-width store

    return kernel


def separable_conv_block(x_nchw, dw_weight, pw_weight, pw_bias, *, grid_steps=None):
    """Depthwise 5x5 (pad=2, no bias) -> pointwise 1x1 (+bias) -> ReLU.

    x_nchw   : (N, C, H, W)
    dw_weight: (C, 1, K, K)     (PyTorch depthwise layout)
    pw_weight: (Cout, C, 1, 1)
    pw_bias  : (Cout,)
    returns  : (N, Cout, H, W)
    """
    N, C, H, W = x_nchw.shape
    Cout = pw_weight.shape[0]
    K = dw_weight.shape[-1]
    P = K // 2
    L = H * W

    if grid_steps is None:
        # >= 2 parallel steps so v7x's two TensorCores both get work; Nb = N/G images
        # per step amortize the fixed per-step cost on single-TC v5e/v6e.
        grid_steps = 2 if (N >= 2 and N % 2 == 0) else 1
    assert N % grid_steps == 0
    Nb = N // grid_steps

    # --- tiny host-side weight prep (activation-sized tensors are never touched) ---
    lane = jnp.arange(L, dtype=jnp.int32)
    w_of = lane % W
    # Row-wrap mask per horizontal offset dw = kw - P: a source lane contributes only
    # if it stays in the same image row after the kw column shift.
    wrap_mask = jnp.stack(
        [((w_of - (kw - P) >= 0) & (w_of - (kw - P) < W)).astype(jnp.float32)
         for kw in range(K)])                                    # (K, L)
    dwt = dw_weight.reshape(C, K * K).astype(jnp.float32)        # [c, kh*K+kw]
    dwb = (dwt.T.reshape(K, K, C, 1) * wrap_mask.reshape(1, K, 1, L)).reshape(K * K, C, L)
    pwb = jnp.broadcast_to(
        pw_weight.reshape(Cout, C).astype(jnp.float32).T.reshape(C, Cout, 1),
        (C, Cout, L))
    biasb = jnp.broadcast_to(pw_bias.astype(jnp.float32).reshape(Cout, 1), (Cout, L))

    x_flat = x_nchw.reshape(N, C, L)                             # contiguous -> free

    kernel = _make_kernel(Nb, C, Cout, H, W, K, P)

    # NOTE: for large images, add an H*W-tiling grid axis (row-aligned chunks with
    # 2-row halos) and size the tile against the per-generation VMEM (v7x: 64 MiB
    # physical / 32 MiB default scoped; v5e default scoped is only 16 MiB) via
    # pltpu.CompilerParams(vmem_limit_bytes=...).  At these toy shapes the whole
    # working set is a few hundred KiB, so the defaults are fine.
    out_flat = pl.pallas_call(
        kernel,
        out_shape=jax.ShapeDtypeStruct((N, Cout, L), x_nchw.dtype),
        grid_spec=pltpu.PrefetchScalarGridSpec(
            num_scalar_prefetch=0,
            grid=(grid_steps,),
            in_specs=[
                pl.BlockSpec((Nb, C, L), lambda g: (g, 0, 0)),
                pl.BlockSpec((K * K, C, L), lambda g: (0, 0, 0)),
                pl.BlockSpec((C, Cout, L), lambda g: (0, 0, 0)),
                pl.BlockSpec((Cout, L), lambda g: (0, 0)),
            ],
            out_specs=pl.BlockSpec((Nb, Cout, L), lambda g: (g, 0, 0)),
        ),
        compiler_params=pltpu.CompilerParams(
            dimension_semantics=("parallel",)),
    )(x_flat, dwb, pwb, biasb)

    return out_flat.reshape(N, Cout, H, W)


def _reference(x_nchw, dw_weight, pw_weight, pw_bias):
    """Pure-JAX reference (lax conv) matching PyTorch semantics."""
    C = x_nchw.shape[1]
    P = dw_weight.shape[-1] // 2
    y = jax.lax.conv_general_dilated(
        x_nchw, dw_weight, window_strides=(1, 1), padding=((P, P), (P, P)),
        dimension_numbers=("NCHW", "OIHW", "NCHW"), feature_group_count=C)
    y = jax.lax.conv_general_dilated(
        y, pw_weight, window_strides=(1, 1), padding=((0, 0), (0, 0)),
        dimension_numbers=("NCHW", "OIHW", "NCHW"))
    return jnp.maximum(y + pw_bias.reshape(1, -1, 1, 1), 0.0)


if __name__ == "__main__":
    key = jax.random.PRNGKey(0)
    k_x, k_dw, k_pw, k_b = jax.random.split(key, 4)

    N, Cin, Cout, H, W = 2, 4, 8, 16, 16

    x = jax.random.normal(k_x, (N, Cin, H, W), dtype=jnp.float32)
    dw_weight = jax.random.normal(k_dw, (Cin, 1, 5, 5), dtype=jnp.float32) * 0.1
    pw_weight = jax.random.normal(k_pw, (Cout, Cin, 1, 1), dtype=jnp.float32) * 0.1
    pw_bias = jax.random.normal(k_b, (Cout,), dtype=jnp.float32) * 0.1

    out = jax.block_until_ready(separable_conv_block(x, dw_weight, pw_weight, pw_bias))
    ref = jax.block_until_ready(_reference(x, dw_weight, pw_weight, pw_bias))

    assert out.shape == (N, Cout, H, W)
    assert jnp.allclose(out, ref, atol=1e-4, rtol=1e-4), float(jnp.max(jnp.abs(out - ref)))

    print("KERNEL_OK")
</pallas_src>

<mosaic_0001>
module attributes {stable_mosaic.version = 11 : i64} {
  func.func @kernel(%arg0: i32, %arg1: memref<1x4x256xf32, #tpu.memory_space<vmem>>, %arg2: memref<25x4x256xf32, #tpu.memory_space<vmem>>, %arg3: memref<4x8x256xf32, #tpu.memory_space<vmem>>, %arg4: memref<8x256xf32, #tpu.memory_space<vmem>>, %arg5: memref<1x8x256xf32, #tpu.memory_space<vmem>>) attributes {dimension_semantics = [#tpu.dimension_semantics<parallel>], iteration_bounds = array<i64: 2>, scalar_prefetch = 0 : i64, scratch_operands = 0 : i64, tpu.core_type = #tpu.core_type<tc>, window_params = [{transform_indices = @transform_0, window_bounds = array<i64: 1, 4, 256>}, {pipeline_mode = #tpu.pipeline_mode<synchronous>, transform_indices = @transform_1, window_bounds = array<i64: 25, 4, 256>}, {pipeline_mode = #tpu.pipeline_mode<synchronous>, transform_indices = @transform_2, window_bounds = array<i64: 4, 8, 256>}, {pipeline_mode = #tpu.pipeline_mode<synchronous>, transform_indices = @transform_3, window_bounds = array<i64: 8, 256>}, {transform_indices = @transform_4, window_bounds = array<i64: 1, 8, 256>}]} {
    %c0 = arith.constant 0 : index
    %c0_0 = arith.constant 0 : index
    %c0_1 = arith.constant 0 : index
    %0 = vector.load %arg1[%c0, %c0_0, %c0_1] : memref<1x4x256xf32, #tpu.memory_space<vmem>>, vector<1x4x256xf32>
    %1 = vector.shape_cast %0 : vector<1x4x256xf32> to vector<4x256xf32>
    %cst = arith.constant 0.000000e+00 : f32
    %2 = vector.broadcast %cst : f32 to vector<4x32xf32>
    %3 = vector.extract_strided_slice %1 {offsets = [0, 0], sizes = [4, 224], strides = [1, 1]} : vector<4x256xf32> to vector<4x224xf32>
    %4 = tpu.concatenate %2, %3 in 1 : vector<4x32xf32>, vector<4x224xf32> -> vector<4x256xf32>
    %cst_2 = arith.constant 0.000000e+00 : f32
    %5 = vector.broadcast %cst_2 : f32 to vector<4x16xf32>
    %6 = vector.extract_strided_slice %1 {offsets = [0, 0], sizes = [4, 240], strides = [1, 1]} : vector<4x256xf32> to vector<4x240xf32>
    %7 = tpu.concatenate %5, %6 in 1 : vector<4x16xf32>, vector<4x240xf32> -> vector<4x256xf32>
    %cst_3 = arith.constant 0.000000e+00 : f32
    %8 = vector.broadcast %cst_3 : f32 to vector<4x16xf32>
    %9 = vector.extract_strided_slice %1 {offsets = [0, 16], sizes = [4, 240], strides = [1, 1]} : vector<4x256xf32> to vector<4x240xf32>
    %10 = tpu.concatenate %9, %8 in 1 : vector<4x240xf32>, vector<4x16xf32> -> vector<4x256xf32>
    %cst_4 = arith.constant 0.000000e+00 : f32
    %11 = vector.broadcast %cst_4 : f32 to vector<4x32xf32>
    %12 = vector.extract_strided_slice %1 {offsets = [0, 32], sizes = [4, 224], strides = [1, 1]} : vector<4x256xf32> to vector<4x224xf32>
    %13 = tpu.concatenate %12, %11 in 1 : vector<4x224xf32>, vector<4x32xf32> -> vector<4x256xf32>
    %c0_5 = arith.constant 0 : index
    %c0_6 = arith.constant 0 : index
    %c0_7 = arith.constant 0 : index
    %14 = vector.load %arg2[%c0_5, %c0_6, %c0_7] : memref<25x4x256xf32, #tpu.memory_space<vmem>>, vector<1x4x256xf32>
    %15 = vector.shape_cast %14 : vector<1x4x256xf32> to vector<4x256xf32>
    %16 = arith.mulf %4, %15 : vector<4x256xf32>
    %c5 = arith.constant 5 : index
    %c0_8 = arith.constant 0 : index
    %c0_9 = arith.constant 0 : index
    %17 = vector.load %arg2[%c5, %c0_8, %c0_9] : memref<25x4x256xf32, #tpu.memory_space<vmem>>, vector<1x4x256xf32>
    %18 = vector.shape_cast %17 : vector<1x4x256xf32> to vector<4x256xf32>
    %19 = arith.mulf %7, %18 : vector<4x256xf32>
    %20 = arith.addf %16, %19 : vector<4x256xf32>
    %c10 = arith.constant 10 : index
    %c0_10 = arith.constant 0 : index
    %c0_11 = arith.constant 0 : index
    %21 = vector.load %arg2[%c10, %c0_10, %c0_11] : memref<25x4x256xf32, #tpu.memory_space<vmem>>, vector<1x4x256xf32>
    %22 = vector.shape_cast %21 : vector<1x4x256xf32> to vector<4x256xf32>
    %23 = arith.mulf %1, %22 : vector<4x256xf32>
    %24 = arith.addf %20, %23 : vector<4x256xf32>
    %c15 = arith.constant 15 : index
    %c0_12 = arith.constant 0 : index
    %c0_13 = arith.constant 0 : index
    %25 = vector.load %arg2[%c15, %c0_12, %c0_13] : memref<25x4x256xf32, #tpu.memory_space<vmem>>, vector<1x4x256xf32>
    %26 = vector.shape_cast %25 : vector<1x4x256xf32> to vector<4x256xf32>
    %27 = arith.mulf %10, %26 : vector<4x256xf32>
    %28 = arith.addf %24, %27 : vector<4x256xf32>
    %c20 = arith.constant 20 : index
    %c0_14 = arith.constant 0 : index
    %c0_15 = arith.constant 0 : index
    %29 = vector.load %arg2[%c20, %c0_14, %c0_15] : memref<25x4x256xf32, #tpu.memory_space<vmem>>, vector<1x4x256xf32>
    %30 = vector.shape_cast %29 : vector<1x4x256xf32> to vector<4x256xf32>
    %31 = arith.mulf %13, %30 : vector<4x256xf32>
    %32 = arith.addf %28, %31 : vector<4x256xf32>
    %cst_16 = arith.constant 0.000000e+00 : f32
    %33 = vector.broadcast %cst_16 : f32 to vector<4x2xf32>
    %34 = vector.extract_strided_slice %32 {offsets = [0, 0], sizes = [4, 254], strides = [1, 1]} : vector<4x256xf32> to vector<4x254xf32>
    %35 = tpu.concatenate %33, %34 in 1 : vector<4x2xf32>, vector<4x254xf32> -> vector<4x256xf32>
    %c1 = arith.constant 1 : index
    %c0_17 = arith.constant 0 : index
    %c0_18 = arith.constant 0 : index
    %36 = vector.load %arg2[%c1, %c0_17, %c0_18] : memref<25x4x256xf32, #tpu.memory_space<vmem>>, vector<1x4x256xf32>
    %37 = vector.shape_cast %36 : vector<1x4x256xf32> to vector<4x256xf32>
    %38 = arith.mulf %4, %37 : vector<4x256xf32>
    %c6 = arith.constant 6 : index
    %c0_19 = arith.constant 0 : index
    %c0_20 = arith.constant 0 : index
    %39 = vector.load %arg2[%c6, %c0_19, %c0_20] : memref<25x4x256xf32, #tpu.memory_space<vmem>>, vector<1x4x256xf32>
    %40 = vector.shape_cast %39 : vector<1x4x256xf32> to vector<4x256xf32>
    %41 = arith.mulf %7, %40 : vector<4x256xf32>
    %42 = arith.addf %38, %41 : vector<4x256xf32>
    %c11 = arith.constant 11 : index
    %c0_21 = arith.constant 0 : index
    %c0_22 = arith.constant 0 : index
    %43 = vector.load %arg2[%c11, %c0_21, %c0_22] : memref<25x4x256xf32, #tpu.memory_space<vmem>>, vector<1x4x256xf32>
    %44 = vector.shape_cast %43 : vector<1x4x256xf32> to vector<4x256xf32>
    %45 = arith.mulf %1, %44 : vector<4x256xf32>
    %46 = arith.addf %42, %45 : vector<4x256xf32>
    %c16 = arith.constant 16 : index
    %c0_23 = arith.constant 0 : index
    %c0_24 = arith.constant 0 : index
    %47 = vector.load %arg2[%c16, %c0_23, %c0_24] : memref<25x4x256xf32, #tpu.memory_space<vmem>>, vector<1x4x256xf32>
    %48 = vector.shape_cast %47 : vector<1x4x256xf32> to vector<4x256xf32>
    %49 = arith.mulf %10, %48 : vector<4x256xf32>
    %50 = arith.addf %46, %49 : vector<4x256xf32>
    %c21 = arith.constant 21 : index
    %c0_25 = arith.constant 0 : index
    %c0_26 = arith.constant 0 : index
    %51 = vector.load %arg2[%c21, %c0_25, %c0_26] : memref<25x4x256xf32, #tpu.memory_space<vmem>>, vector<1x4x256xf32>
    %52 = vector.shape_cast %51 : vector<1x4x256xf32> to vector<4x256xf32>
    %53 = arith.mulf %13, %52 : vector<4x256xf32>
    %54 = arith.addf %50, %53 : vector<4x256xf32>
    %cst_27 = arith.constant 0.000000e+00 : f32
    %55 = vector.broadcast %cst_27 : f32 to vector<4x1xf32>
    %56 = vector.extract_strided_slice %54 {offsets = [0, 0], sizes = [4, 255], strides = [1, 1]} : vector<4x256xf32> to vector<4x255xf32>
    %57 = tpu.concatenate %55, %56 in 1 : vector<4x1xf32>, vector<4x255xf32> -> vector<4x256xf32>
    %58 = arith.addf %35, %57 : vector<4x256xf32>
    %c2 = arith.constant 2 : index
    %c0_28 = arith.constant 0 : index
    %c0_29 = arith.constant 0 : index
    %59 = vector.load %arg2[%c2, %c0_28, %c0_29] : memref<25x4x256xf32, #tpu.memory_space<vmem>>, vector<1x4x256xf32>
    %60 = vector.shape_cast %59 : vector<1x4x256xf32> to vector<4x256xf32>
    %61 = arith.mulf %4, %60 : vector<4x256xf32>
    %c7 = arith.constant 7 : index
    %c0_30 = arith.constant 0 : index
    %c0_31 = arith.constant 0 : index
    %62 = vector.load %arg2[%c7, %c0_30, %c0_31] : memref<25x4x256xf32, #tpu.memory_space<vmem>>, vector<1x4x256xf32>
    %63 = vector.shape_cast %62 : vector<1x4x256xf32> to vector<4x256xf32>
    %64 = arith.mulf %7, %63 : vector<4x256xf32>
    %65 = arith.addf %61, %64 : vector<4x256xf32>
    %c12 = arith.constant 12 : index
    %c0_32 = arith.constant 0 : index
    %c0_33 = arith.constant 0 : index
    %66 = vector.load %arg2[%c12, %c0_32, %c0_33] : memref<25x4x256xf32, #tpu.memory_space<vmem>>, vector<1x4x256xf32>
    %67 = vector.shape_cast %66 : vector<1x4x256xf32> to vector<4x256xf32>
    %68 = arith.mulf %1, %67 : vector<4x256xf32>
    %69 = arith.addf %65, %68 : vector<4x256xf32>
    %c17 = arith.constant 17 : index
    %c0_34 = arith.constant 0 : index
    %c0_35 = arith.constant 0 : index
    %70 = vector.load %arg2[%c17, %c0_34, %c0_35] : memref<25x4x256xf32, #tpu.memory_space<vmem>>, vector<1x4x256xf32>
    %71 = vector.shape_cast %70 : vector<1x4x256xf32> to vector<4x256xf32>
    %72 = arith.mulf %10, %71 : vector<4x256xf32>
    %73 = arith.addf %69, %72 : vector<4x256xf32>
    %c22 = arith.constant 22 : index
    %c0_36 = arith.constant 0 : index
    %c0_37 = arith.constant 0 : index
    %74 = vector.load %arg2[%c22, %c0_36, %c0_37] : memref<25x4x256xf32, #tpu.memory_space<vmem>>, vector<1x4x256xf32>
    %75 = vector.shape_cast %74 : vector<1x4x256xf32> to vector<4x256xf32>
    %76 = arith.mulf %13, %75 : vector<4x256xf32>
    %77 = arith.addf %73, %76 : vector<4x256xf32>
    %78 = arith.addf %58, %77 : vector<4x256xf32>
    %c3 = arith.constant 3 : index
    %c0_38 = arith.constant 0 : index
    %c0_39 = arith.constant 0 : index
    %79 = vector.load %arg2[%c3, %c0_38, %c0_39] : memref<25x4x256xf32, #tpu.memory_space<vmem>>, vector<1x4x256xf32>
    %80 = vector.shape_cast %79 : vector<1x4x256xf32> to vector<4x256xf32>
    %81 = arith.mulf %4, %80 : vector<4x256xf32>
    %c8 = arith.constant 8 : index
    %c0_40 = arith.constant 0 : index
    %c0_41 = arith.constant 0 : index
    %82 = vector.load %arg2[%c8, %c0_40, %c0_41] : memref<25x4x256xf32, #tpu.memory_space<vmem>>, vector<1x4x256xf32>
    %83 = vector.shape_cast %82 : vector<1x4x256xf32> to vector<4x256xf32>
    %84 = arith.mulf %7, %83 : vector<4x256xf32>
    %85 = arith.addf %81, %84 : vector<4x256xf32>
    %c13 = arith.constant 13 : index
    %c0_42 = arith.constant 0 : index
    %c0_43 = arith.constant 0 : index
    %86 = vector.load %arg2[%c13, %c0_42, %c0_43] : memref<25x4x256xf32, #tpu.memory_space<vmem>>, vector<1x4x256xf32>
    %87 = vector.shape_cast %86 : vector<1x4x256xf32> to vector<4x256xf32>
    %88 = arith.mulf %1, %87 : vector<4x256xf32>
    %89 = arith.addf %85, %88 : vector<4x256xf32>
    %c18 = arith.constant 18 : index
    %c0_44 = arith.constant 0 : index
    %c0_45 = arith.constant 0 : index
    %90 = vector.load %arg2[%c18, %c0_44, %c0_45] : memref<25x4x256xf32, #tpu.memory_space<vmem>>, vector<1x4x256xf32>
    %91 = vector.shape_cast %90 : vector<1x4x256xf32> to vector<4x256xf32>
    %92 = arith.mulf %10, %91 : vector<4x256xf32>
    %93 = arith.addf %89, %92 : vector<4x256xf32>
    %c23 = arith.constant 23 : index
    %c0_46 = arith.constant 0 : index
    %c0_47 = arith.constant 0 : index
    %94 = vector.load %arg2[%c23, %c0_46, %c0_47] : memref<25x4x256xf32, #tpu.memory_space<vmem>>, vector<1x4x256xf32>
    %95 = vector.shape_cast %94 : vector<1x4x256xf32> to vector<4x256xf32>
    %96 = arith.mulf %13, %95 : vector<4x256xf32>
    %97 = arith.addf %93, %96 : vector<4x256xf32>
    %cst_48 = arith.constant 0.000000e+00 : f32
    %98 = vector.broadcast %cst_48 : f32 to vector<4x1xf32>
    %99 = vector.extract_strided_slice %97 {offsets = [0, 1], sizes = [4, 255], strides = [1, 1]} : vector<4x256xf32> to vector<4x255xf32>
    %100 = tpu.concatenate %99, %98 in 1 : vector<4x255xf32>, vector<4x1xf32> -> vector<4x256xf32>
    %101 = arith.addf %78, %100 : vector<4x256xf32>
    %c4 = arith.constant 4 : index
    %c0_49 = arith.constant 0 : index
    %c0_50 = arith.constant 0 : index
    %102 = vector.load %arg2[%c4, %c0_49, %c0_50] : memref<25x4x256xf32, #tpu.memory_space<vmem>>, vector<1x4x256xf32>
    %103 = vector.shape_cast %102 : vector<1x4x256xf32> to vector<4x256xf32>
    %104 = arith.mulf %4, %103 : vector<4x256xf32>
    %c9 = arith.constant 9 : index
    %c0_51 = arith.constant 0 : index
    %c0_52 = arith.constant 0 : index
    %105 = vector.load %arg2[%c9, %c0_51, %c0_52] : memref<25x4x256xf32, #tpu.memory_space<vmem>>, vector<1x4x256xf32>
    %106 = vector.shape_cast %105 : vector<1x4x256xf32> to vector<4x256xf32>
    %107 = arith.mulf %7, %106 : vector<4x256xf32>
    %108 = arith.addf %104, %107 : vector<4x256xf32>
    %c14 = arith.constant 14 : index
    %c0_53 = arith.constant 0 : index
    %c0_54 = arith.constant 0 : index
    %109 = vector.load %arg2[%c14, %c0_53, %c0_54] : memref<25x4x256xf32, #tpu.memory_space<vmem>>, vector<1x4x256xf32>
    %110 = vector.shape_cast %109 : vector<1x4x256xf32> to vector<4x256xf32>
    %111 = arith.mulf %1, %110 : vector<4x256xf32>
    %112 = arith.addf %108, %111 : vector<4x256xf32>
    %c19 = arith.constant 19 : index
    %c0_55 = arith.constant 0 : index
    %c0_56 = arith.constant 0 : index
    %113 = vector.load %arg2[%c19, %c0_55, %c0_56] : memref<25x4x256xf32, #tpu.memory_space<vmem>>, vector<1x4x256xf32>
    %114 = vector.shape_cast %113 : vector<1x4x256xf32> to vector<4x256xf32>
    %115 = arith.mulf %10, %114 : vector<4x256xf32>
    %116 = arith.addf %112, %115 : vector<4x256xf32>
    %c24 = arith.constant 24 : index
    %c0_57 = arith.constant 0 : index
    %c0_58 = arith.constant 0 : index
    %117 = vector.load %arg2[%c24, %c0_57, %c0_58] : memref<25x4x256xf32, #tpu.memory_space<vmem>>, vector<1x4x256xf32>
    %118 = vector.shape_cast %117 : vector<1x4x256xf32> to vector<4x256xf32>
    %119 = arith.mulf %13, %118 : vector<4x256xf32>
    %120 = arith.addf %116, %119 : vector<4x256xf32>
    %cst_59 = arith.constant 0.000000e+00 : f32
    %121 = vector.broadcast %cst_59 : f32 to vector<4x2xf32>
    %122 = vector.extract_strided_slice %120 {offsets = [0, 2], sizes = [4, 254], strides = [1, 1]} : vector<4x256xf32> to vector<4x254xf32>
    %123 = tpu.concatenate %122, %121 in 1 : vector<4x254xf32>, vector<4x2xf32> -> vector<4x256xf32>
    %124 = arith.addf %101, %123 : vector<4x256xf32>
    %c0_60 = arith.constant 0 : index
    %c0_61 = arith.constant 0 : index
    %125 = vector.load %arg4[%c0_60, %c0_61] : memref<8x256xf32, #tpu.memory_space<vmem>>, vector<8x256xf32>
    %c0_62 = arith.constant 0 : index
    %c0_63 = arith.constant 0 : index
    %c0_64 = arith.constant 0 : index
    %126 = vector.load %arg3[%c0_62, %c0_63, %c0_64] : memref<4x8x256xf32, #tpu.memory_space<vmem>>, vector<1x8x256xf32>
    %127 = vector.shape_cast %126 : vector<1x8x256xf32> to vector<8x256xf32>
    %128 = vector.extract_strided_slice %124 {offsets = [0, 0], sizes = [1, 256], strides = [1, 1]} : vector<4x256xf32> to vector<1x256xf32>
    %129 = vector.shape_cast %128 : vector<1x256xf32> to vector<256xf32>
    %130 = vector.shape_cast %129 : vector<256xf32> to vector<1x256xf32>
    %131 = vector.broadcast %130 : vector<1x256xf32> to vector<8x256xf32>
    %132 = arith.mulf %127, %131 : vector<8x256xf32>
    %133 = arith.addf %125, %132 : vector<8x256xf32>
    %c1_65 = arith.constant 1 : index
    %c0_66 = arith.constant 0 : index
    %c0_67 = arith.constant 0 : index
    %134 = vector.load %arg3[%c1_65, %c0_66, %c0_67] : memref<4x8x256xf32, #tpu.memory_space<vmem>>, vector<1x8x256xf32>
    %135 = vector.shape_cast %134 : vector<1x8x256xf32> to vector<8x256xf32>
    %136 = vector.extract_strided_slice %124 {offsets = [1, 0], sizes = [1, 256], strides = [1, 1]} : vector<4x256xf32> to vector<1x256xf32>
    %137 = vector.shape_cast %136 : vector<1x256xf32> to vector<256xf32>
    %138 = vector.shape_cast %137 : vector<256xf32> to vector<1x256xf32>
    %139 = vector.broadcast %138 : vector<1x256xf32> to vector<8x256xf32>
    %140 = arith.mulf %135, %139 : vector<8x256xf32>
    %141 = arith.addf %133, %140 : vector<8x256xf32>
    %c2_68 = arith.constant 2 : index
    %c0_69 = arith.constant 0 : index
    %c0_70 = arith.constant 0 : index
    %142 = vector.load %arg3[%c2_68, %c0_69, %c0_70] : memref<4x8x256xf32, #tpu.memory_space<vmem>>, vector<1x8x256xf32>
    %143 = vector.shape_cast %142 : vector<1x8x256xf32> to vector<8x256xf32>
    %144 = vector.extract_strided_slice %124 {offsets = [2, 0], sizes = [1, 256], strides = [1, 1]} : vector<4x256xf32> to vector<1x256xf32>
    %145 = vector.shape_cast %144 : vector<1x256xf32> to vector<256xf32>
    %146 = vector.shape_cast %145 : vector<256xf32> to vector<1x256xf32>
    %147 = vector.broadcast %146 : vector<1x256xf32> to vector<8x256xf32>
    %148 = arith.mulf %143, %147 : vector<8x256xf32>
    %149 = arith.addf %141, %148 : vector<8x256xf32>
    %c3_71 = arith.constant 3 : index
    %c0_72 = arith.constant 0 : index
    %c0_73 = arith.constant 0 : index
    %150 = vector.load %arg3[%c3_71, %c0_72, %c0_73] : memref<4x8x256xf32, #tpu.memory_space<vmem>>, vector<1x8x256xf32>
    %151 = vector.shape_cast %150 : vector<1x8x256xf32> to vector<8x256xf32>
    %152 = vector.extract_strided_slice %124 {offsets = [3, 0], sizes = [1, 256], strides = [1, 1]} : vector<4x256xf32> to vector<1x256xf32>
    %153 = vector.shape_cast %152 : vector<1x256xf32> to vector<256xf32>
    %154 = vector.shape_cast %153 : vector<256xf32> to vector<1x256xf32>
    %155 = vector.broadcast %154 : vector<1x256xf32> to vector<8x256xf32>
    %156 = arith.mulf %151, %155 : vector<8x256xf32>
    %157 = arith.addf %149, %156 : vector<8x256xf32>
    %cst_74 = arith.constant 0.000000e+00 : f32
    %158 = vector.broadcast %cst_74 : f32 to vector<8x256xf32>
    %159 = arith.maximumf %157, %158 : vector<8x256xf32>
    %c0_75 = arith.constant 0 : index
    %c0_76 = arith.constant 0 : index
    %c0_77 = arith.constant 0 : index
    %160 = vector.load %arg5[%c0_75, %c0_76, %c0_77] : memref<1x8x256xf32, #tpu.memory_space<vmem>>, vector<1x8x256xf32>
    %161 = vector.shape_cast %160 : vector<1x8x256xf32> to vector<8x256xf32>
    %162 = vector.shape_cast %159 : vector<8x256xf32> to vector<1x8x256xf32>
    tpu.vector_store %arg5[%c0_75, %c0_76, %c0_77], %162 {strides = array<i32>} : memref<1x8x256xf32, #tpu.memory_space<vmem>>, vector<1x8x256xf32>,
    return
  }
  func.func @transform_0(%arg0: i32) -> (i32, i32, i32) {
    %c0_i32 = arith.constant 0 : i32
    %c0_i32_0 = arith.constant 0 : i32
    %c0_i32_1 = arith.constant 0 : i32
    return %arg0, %c0_i32, %c0_i32_0 : i32, i32, i32
  }
  func.func @transform_1(%arg0: i32) -> (i32, i32, i32) {
    %c0_i32 = arith.constant 0 : i32
    %c0_i32_0 = arith.constant 0 : i32
    %c0_i32_1 = arith.constant 0 : i32
    %c0_i32_2 = arith.constant 0 : i32
    return %c0_i32, %c0_i32_0, %c0_i32_1 : i32, i32, i32
  }
  func.func @transform_2(%arg0: i32) -> (i32, i32, i32) {
    %c0_i32 = arith.constant 0 : i32
    %c0_i32_0 = arith.constant 0 : i32
    %c0_i32_1 = arith.constant 0 : i32
    %c0_i32_2 = arith.constant 0 : i32
    return %c0_i32, %c0_i32_0, %c0_i32_1 : i32, i32, i32
  }
  func.func @transform_3(%arg0: i32) -> (i32, i32) {
    %c0_i32 = arith.constant 0 : i32
    %c0_i32_0 = arith.constant 0 : i32
    %c0_i32_1 = arith.constant 0 : i32
    return %c0_i32, %c0_i32_0 : i32, i32
  }
  func.func @transform_4(%arg0: i32) -> (i32, i32, i32) {
    %c0_i32 = arith.constant 0 : i32
    %c0_i32_0 = arith.constant 0 : i32
    %c0_i32_1 = arith.constant 0 : i32
    return %arg0, %c0_i32, %c0_i32_0 : i32, i32, i32
  }
}

</mosaic_0001>

<llo_original>
// kernel: tpu_custom_call.1
$region0: #{tpu_custom_call.1}
  #allocation0 [shape = 'u32[]', space=smem, size = 0x4, offset = 0x4, fixed_abs, tag = 'smem constant byte address 0x4 - core index']
  #allocation1 [shape = 'u32[144,128]{1,0:T(1,128)}', space=vmem, size = 0x12000, scoped, tag = 'internal scratch']
  %s0 = inlined_call_operand.hbm [shape: f32[2,4,256], index: 0, kind: input, shape index: {}]
  %s1 = inlined_call_operand.hbm [shape: f32[25,4,256], index: 1, kind: input, shape index: {}]
  %s2 = inlined_call_operand.hbm [shape: f32[4,8,256], index: 2, kind: input, shape index: {}]
  %s3 = inlined_call_operand.hbm [shape: f32[8,256], index: 3, kind: input, shape index: {}]
  %s4 = inlined_call_operand.hbm [shape: f32[2,8,256], index: 4, kind: output, shape index: {}]
  %s5 = sld [smem:[#allocation0]]
  $region65: #{tpu_custom_call.1} parent=0
    _
  %s7 = ssub.s32 1, %s5
  %s8 = scalar_select 0, %s7, %s5
  $region1: #{tpu_custom_call.1} parent=0
    #allocation2 [shape = 'u8[8192]{0}', space=vmem, size = 0x2000, scoped, tag = 'input window, operand 0']
    #allocation3 [shape = 's32[2]{0}', space=sflag, size = 0x8, scoped, tag = 'scoped memory for tpu_custom_call.1']
    #allocation4 [shape = 's32[2]{0}', space=sflag, size = 0x8, scoped, tag = 'scoped memory for tpu_custom_call.1']
    #allocation5 [shape = 'u8[102400]{0}', space=vmem, size = 0x19000, scoped, tag = 'input window, operand 1, single buffered']
    #allocation6 [shape = 's32[1]{0}', space=sflag, size = 0x4, scoped, tag = 'scoped memory for tpu_custom_call.1']
    #allocation7 [shape = 'u8[32768]{0}', space=vmem, size = 0x8000, scoped, tag = 'input window, operand 2, single buffered']
    #allocation8 [shape = 'u8[8192]{0}', space=vmem, size = 0x2000, scoped, tag = 'input window, operand 3, single buffered']
    #allocation9 [shape = 's32[1]{0}', space=sflag, size = 0x4, scoped, tag = 'scoped memory for tpu_custom_call.1']
    #allocation10 [shape = 'u8[16384]{0}', space=vmem, size = 0x4000, scoped, tag = 'output window, operand 0']
    %9 = vsyncpa [#allocation3], 0
    %s10 = scalar_lea.sflag [#allocation3], 1
    %11 = vsyncpa %s10, 0
    %12 = vsyncpa [#allocation6], 0
    %13 = vsyncpa [#allocation9], 0
    %14 = vsyncpa [#allocation4], 0
    %s15 = scalar_lea.sflag [#allocation4], 1
    %16 = vsyncpa %s15, 0
    loop: start=0, step=1, limit=4
    $region2: #{tpu_custom_call.1} parent=1 // loop_pre_header
      _
    $region3: #{tpu_custom_call.1} parent=1 // loop_header
      %s18 = sphi 0, %s22
      %p19 = scmp.ge.s32.totalorder %s18, 4
      %s28 = sphi 0, %s30
      %s31 = sphi 0, %s28
      %s32 = sphi 0, %s31
      %s48 = sphi 0, %s32
      %s52 = sphi 0, %s52
      %s54 = sphi 0, %s52
      %s55 = sphi 0, %s54
      %s69 = sphi 0, %s55
      %s73 = sphi 0, %s73
      %s75 = sphi 0, %s73
      %s76 = sphi 0, %s75
      %s90 = sphi 0, %s76
      %s94 = sphi 0, %s94
      %s96 = sphi 0, %s94
      %s97 = sphi 0, %s96
      %s111 = sphi 0, %s97
      %s117 = sphi 0, %s119
      %s120 = sphi 0, %s117
      %s121 = sphi 0, %s120
      %s137 = sphi 0, %s121
    $region4: #{tpu_custom_call.1} parent=1 // loop_header_branch
      %21 = sbr.rel (%p19) target = $region8
    $region5: #{tpu_custom_call.1} parent=1 // loop_body
      %s23 = ssub.s32 %s18, 1
      %s24 = ssub.s32 %s18, 2
      %s25 = sadd.s32 %s18, 1
      %s26 = ssub.s32 %s18, %s25
      %p27 = scmp.eq.s32.totalorder %s26, 0
      %s29 = sadd.s32 %s28, 1
      %s30 = scalar_select %p27, %s28, %s29
      %p33 = pneg %p27
      %p34 = scmp.eq.s32.totalorder %s18, 1
      %p35 = por %p33, %p34
      %p36 = scmp.ne.s32.totalorder %s28, %s31
      %p37 = scmp.eq.s32.totalorder %s18, 0
      %p38 = por %p36, %p37
      %p39 = scmp.ne.s32.totalorder %s28, %s31
      %p40 = scmp.eq.s32.totalorder %s23, 1
      %p41 = por %p39, %p40
      %p42 = scmp.ne.s32.totalorder %s31, %s32
      %p43 = scmp.eq.s32.totalorder %s23, 0
      %p44 = por %p42, %p43
      %p45 = scmp.ne.s32.totalorder %s31, %s32
      %p46 = scmp.eq.s32.totalorder %s24, 1
      %p47 = por %p45, %p46
      %p49 = scmp.ne.s32.totalorder %s32, %s48
      %p50 = scmp.eq.s32.totalorder %s24, 0
      %p51 = por %p49, %p50
      %s53 = sadd.s32 %s52, 1
      %p56 = scmp.eq.s32.totalorder %s18, 1
      %p57 = scmp.ne.s32.totalorder %s52, %s54
      %p58 = scmp.eq.s32.totalorder %s18, 0
      %p59 = por %p57, %p58
      %p60 = scmp.ne.s32.totalorder %s52, %s54
      %p61 = scmp.eq.s32.totalorder %s23, 1
      %p62 = por %p60, %p61
      %p63 = scmp.ne.s32.totalorder %s54, %s55
      %p64 = scmp.eq.s32.totalorder %s23, 0
      %p65 = por %p63, %p64
      %p66 = scmp.ne.s32.totalorder %s54, %s55
      %p67 = scmp.eq.s32.totalorder %s24, 1
      %p68 = por %p66, %p67
      %p70 = scmp.ne.s32.totalorder %s55, %s69
      %p71 = scmp.eq.s32.totalorder %s24, 0
      %p72 = por %p70, %p71
      %s74 = sadd.s32 %s73, 1
      %p77 = scmp.eq.s32.totalorder %s18, 1
      %p78 = scmp.ne.s32.totalorder %s73, %s75
      %p79 = scmp.eq.s32.totalorder %s18, 0
      %p80 = por %p78, %p79
      %p81 = scmp.ne.s32.totalorder %s73, %s75
      %p82 = scmp.eq.s32.totalorder %s23, 1
      %p83 = por %p81, %p82
      %p84 = scmp.ne.s32.totalorder %s75, %s76
      %p85 = scmp.eq.s32.totalorder %s23, 0
      %p86 = por %p84, %p85
      %p87 = scmp.ne.s32.totalorder %s75, %s76
      %p88 = scmp.eq.s32.totalorder %s24, 1
      %p89 = por %p87, %p88
      %p91 = scmp.ne.s32.totalorder %s76, %s90
      %p92 = scmp.eq.s32.totalorder %s24, 0
      %p93 = por %p91, %p92
      %s95 = sadd.s32 %s94, 1
      %p98 = scmp.eq.s32.totalorder %s18, 1
      %p99 = scmp.ne.s32.totalorder %s94, %s96
      %p100 = scmp.eq.s32.totalorder %s18, 0
      %p101 = por %p99, %p100
      %p102 = scmp.ne.s32.totalorder %s94, %s96
      %p103 = scmp.eq.s32.totalorder %s23, 1
      %p104 = por %p102, %p103
      %p105 = scmp.ne.s32.totalorder %s96, %s97
      %p106 = scmp.eq.s32.totalorder %s23, 0
      %p107 = por %p105, %p106
      %p108 = scmp.ne.s32.totalorder %s96, %s97
      %p109 = scmp.eq.s32.totalorder %s24, 1
      %p110 = por %p108, %p109
      %p112 = scmp.ne.s32.totalorder %s97, %s111
      %p113 = scmp.eq.s32.totalorder %s24, 0
      %p114 = por %p112, %p113
      %s115 = ssub.s32 %s18, %s25
      %p116 = scmp.eq.s32.totalorder %s115, 0
      %s118 = sadd.s32 %s117, 1
      %s119 = scalar_select %p116, %s117, %s118
      %p122 = pneg %p116
      %p123 = scmp.eq.s32.totalorder %s18, 1
      %p124 = por %p122, %p123
      %p125 = scmp.ne.s32.totalorder %s117, %s120
      %p126 = scmp.eq.s32.totalorder %s18, 0
      %p127 = por %p125, %p126
      %p128 = scmp.ne.s32.totalorder %s117, %s120
      %p129 = scmp.eq.s32.totalorder %s23, 1
      %p130 = por %p128, %p129
      %p131 = scmp.ne.s32.totalorder %s120, %s121
      %p132 = scmp.eq.s32.totalorder %s23, 0
      %p133 = por %p131, %p132
      %p134 = scmp.ne.s32.totalorder %s120, %s121
      %p135 = scmp.eq.s32.totalorder %s24, 1
      %p136 = por %p134, %p135
      %p138 = scmp.ne.s32.totalorder %s121, %s137
      %p139 = scmp.eq.s32.totalorder %s24, 0
      %p140 = por %p138, %p139
      %p141 = scmp.le.s32.totalorder 1, %s18
      %p142 = scmp.lt.s32.totalorder %s18, 3
      %p143 = pnand %p141, %p142
      %p144 = pneg %p143
      // Predicated region
      $region9: #{tpu_custom_call.1} parent=5 // pred_check
        _
      $region10: #{tpu_custom_call.1} parent=5 // pred_check_branch
        %146 = sbr.rel (%p143) target = $region12
      $region11: #{tpu_custom_call.1} parent=5 // pred_region
        %s147 = ssub.s32 %s18, 1
        // Predicated region
        $region13: #{tpu_custom_call.1} parent=11 // pred_check
          %p148 = pneg %p65
        $region14: #{tpu_custom_call.1} parent=11 // pred_check_branch
          %150 = sbr.rel (%p148) target = $region16
        $region15: #{tpu_custom_call.1} parent=11 // pred_region
          %s152 = ssub.s32 3200, 3200
          %153 = vsyncadd [#allocation6], %s152
          %s154 = sshll.u32 [#allocation5], 4
          %s155 = int_to_ptr.vmem [resolvable:$true] %s154
          %160 = dma.hbm_to_vmem [thread:$0]  %s1, 3200, %s155, [#allocation6], 128, 128, 8
        $region16: #{tpu_custom_call.1} parent=11 // pred_fallthru
          _
        // Predicated region
        $region17: #{tpu_custom_call.1} parent=11 // pred_check
          %p161 = pneg %p86
        $region18: #{tpu_custom_call.1} parent=11 // pred_check_branch
          %163 = sbr.rel (%p161) target = $region20
        $region19: #{tpu_custom_call.1} parent=11 // pred_region
          %s165 = ssub.s32 1024, 1024
          %166 = vsyncadd [#allocation6], %s165
          %s167 = sshll.u32 [#allocation7], 4
          %s168 = int_to_ptr.vmem [resolvable:$true] %s167
          %173 = dma.hbm_to_vmem [thread:$0]  %s2, 1024, %s168, [#allocation6], 256, 256, 16
        $region20: #{tpu_custom_call.1} parent=11 // pred_fallthru
          _
        // Predicated region
        $region21: #{tpu_custom_call.1} parent=11 // pred_check
          %p174 = pneg %p107
        $region22: #{tpu_custom_call.1} parent=11 // pred_check_branch
          %176 = sbr.rel (%p174) target = $region24
        $region23: #{tpu_custom_call.1} parent=11 // pred_region
          %s178 = ssub.s32 256, 256
          %179 = vsyncadd [#allocation9], %s178
          %s181 = sshll.u32 [#allocation8], 4
          %s182 = int_to_ptr.vmem [resolvable:$true] %s181
          %184 = dma.hbm_to_vmem [thread:$0]  %s3, 256, %s182, [#allocation9]
        $region24: #{tpu_custom_call.1} parent=11 // pred_fallthru
          _
      $region12: #{tpu_custom_call.1} parent=5 // pred_fallthru
        _
      %p185 = scmp.lt.s32.totalorder %s18, 2
      // Predicated region
      $region25: #{tpu_custom_call.1} parent=5 // pred_check
        %p186 = pneg %p185
      $region26: #{tpu_custom_call.1} parent=5 // pred_check_branch
        %188 = sbr.rel (%p186) target = $region28
      $region27: #{tpu_custom_call.1} parent=5 // pred_region
        // Predicated region
        $region29: #{tpu_custom_call.1} parent=27 // pred_check
          %p189 = pneg %p38
        $region30: #{tpu_custom_call.1} parent=27 // pred_check_branch
          %191 = sbr.rel (%p189) target = $region32
        $region31: #{tpu_custom_call.1} parent=27 // pred_region
          %s192 = sand.u32 %s28, 1
          %s193 = scalar_lea.sflag [#allocation3], %s192
          %s194 = sand.u32 %s28, 1
          %s195 = smul.addr %s194, 8
          %s196 = scalar_lea.vmem [#allocation2], %s195
          %s198 = ssub.s32 128, 128
          %199 = vsyncadd %s193, %s198
          %s200 = smul.addr %s18, 2
          %s201 = smul.addr %s200, 64
          %s202 = scalar_lea.hbm %s0, %s201
          %s204 = sshll.u32 %s196, 4
          %s205 = int_to_ptr.vmem [resolvable:$true] %s204
          %207 = dma.hbm_to_vmem [thread:$0]  %s202, 128, %s205, %s193
        $region32: #{tpu_custom_call.1} parent=27 // pred_fallthru
          _
      $region28: #{tpu_custom_call.1} parent=5 // pred_fallthru
        _
      %p208 = scmp.le.s32.totalorder 1, %s18
      %p209 = scmp.lt.s32.totalorder %s18, 3
      %p210 = pnand %p208, %p209
      %p211 = pneg %p210
      // Predicated region
      $region33: #{tpu_custom_call.1} parent=5 // pred_check
        _
      $region34: #{tpu_custom_call.1} parent=5 // pred_check_branch
        %213 = sbr.rel (%p210) target = $region36
      $region35: #{tpu_custom_call.1} parent=5 // pred_region
        %s214 = ssub.s32 %s18, 1
        %s215 = sand.u32 %s31, 1
        %s216 = scalar_lea.sflag [#allocation3], %s215
        %s217 = sand.u32 %s31, 1
        %s218 = smul.addr %s217, 8
        %s219 = scalar_lea.vmem [#allocation2], %s218
        // Predicated region
        $region37: #{tpu_custom_call.1} parent=35 // pred_check
          %p220 = pneg %p44
        $region38: #{tpu_custom_call.1} parent=35 // pred_check_branch
          %222 = sbr.rel (%p220) target = $region40
        $region39: #{tpu_custom_call.1} parent=35 // pred_region
          %223 = dma.done %s216, 128
        $region40: #{tpu_custom_call.1} parent=35 // pred_fallthru
          _
        // Predicated region
        $region41: #{tpu_custom_call.1} parent=35 // pred_check
          %p224 = pneg %p65
        $region42: #{tpu_custom_call.1} parent=35 // pred_check_branch
          %226 = sbr.rel (%p224) target = $region44
        $region43: #{tpu_custom_call.1} parent=35 // pred_region
          %227 = dma.done [#allocation6], 3200
        $region44: #{tpu_custom_call.1} parent=35 // pred_fallthru
          _
        // Predicated region
        $region45: #{tpu_custom_call.1} parent=35 // pred_check
          %p228 = pneg %p86
        $region46: #{tpu_custom_call.1} parent=35 // pred_check_branch
          %230 = sbr.rel (%p228) target = $region48
        $region47: #{tpu_custom_call.1} parent=35 // pred_region
          %231 = dma.done [#allocation6], 1024
        $region48: #{tpu_custom_call.1} parent=35 // pred_fallthru
          _
        // Predicated region
        $region49: #{tpu_custom_call.1} parent=35 // pred_check
          %p232 = pneg %p107
        $region50: #{tpu_custom_call.1} parent=35 // pred_check_branch
          %234 = sbr.rel (%p232) target = $region52
        $region51: #{tpu_custom_call.1} parent=35 // pred_region
          %235 = dma.done [#allocation9], 256
        $region52: #{tpu_custom_call.1} parent=35 // pred_fallthru
          _
        %s236 = sand.u32 %s31, 1
        %s237 = scalar_lea.sflag [#allocation3], %s236
        %s238 = sand.u32 %s31, 1
        %s239 = smul.addr %s238, 8
        %s240 = scalar_lea.vmem [#allocation2], %s239
        %p241 = pneg %p44
        %p242 = pneg %p41
        %p243 = pneg %p65
        %p244 = pneg %p62
        %p245 = pneg %p86
        %p246 = pneg %p83
        %p247 = pneg %p107
        %p248 = pneg %p104
        %p249 = pneg %p133
        %p250 = pneg %p130
        %s251 = sand.u32 %s120, 1
        %s252 = scalar_lea.sflag [#allocation4], %s251
        %s253 = sand.u32 %s120, 1
        %s254 = smul.addr %s253, 16
        %s255 = scalar_lea.vmem [#allocation10], %s254
        %v256 = vld [vmem:[%s219] sm:$0xff]
        %v258 = vcombine.high %v256, %v256
        %259 = vrot.lane.b32.xlu0 %v256, 32
        %v260 = vpop.permute.xlu0 %259
        %261 = vrot.lane.b32.xlu0 %v258, 32
        %v262 = vpop.permute.xlu0 %261
        %vm263 = vcmask 261120
        %v264 = vsel %vm263, %v260, %v262
        %v267 = vsel %vm263, 0.0, %v260
        %268 = vrot.lane.b32.xlu0 %v256, 16
        %v269 = vpop.permute.xlu0 %268
        %270 = vrot.lane.b32.xlu0 %v258, 16
        %v271 = vpop.permute.xlu0 %270
        %vm272 = vcmask 130048
        %v273 = vsel %vm272, %v269, %v271
        %v276 = vsel %vm272, 0.0, %v269
        %277 = vrot.lane.b32.xlu0 %v256, 112
        %v278 = vpop.permute.xlu0 %277
        %279 = vrot.lane.b32.xlu0 %v258, 112
        %v280 = vpop.permute.xlu0 %279
        %vm281 = vcmask 916480
        %v282 = vsel %vm281, %v278, %v280
        %v285 = vsel %vm281, %v280, 0.0
        %286 = vrot.lane.b32.xlu0 %v256, 96
        %v287 = vpop.permute.xlu0 %286
        %288 = vrot.lane.b32.xlu0 %v258, 96
        %v289 = vpop.permute.xlu0 %288
        %vm290 = vcmask 785408
        %v291 = vsel %vm290, %v287, %v289
        %v294 = vsel %vm290, %v289, 0.0
        %v295 = vld [vmem:[#allocation5] sm:$0xff]
        %v297 = vcombine.high %v295, %v295
        %v299 = vmul.f32 %v267, %v295
        %v300 = vmul.f32 %v264, %v297
        %s301 = scalar_lea.vmem [#allocation5], 40
        %v302 = vld [vmem:[%s301] sm:$0xff]
        %v304 = vcombine.high %v302, %v302
        %v306 = vmul.f32 %v276, %v302
        %v307 = vmul.f32 %v273, %v304
        %v308 = vadd.f32 %v299, %v306
        %v309 = vadd.f32 %v300, %v307
        %s310 = scalar_lea.vmem [#allocation5], 80
        %v311 = vld [vmem:[%s310] sm:$0xff]
        %v312 = vmul.f32 %v256, %v311
        %v314 = vcombine.high %v312, %v312
        %v316 = vadd.f32 %v308, %v312
        %v317 = vadd.f32 %v309, %v314
        %s318 = scalar_lea.vmem [#allocation5], 120
        %v319 = vld [vmem:[%s318] sm:$0xff]
        %v321 = vcombine.high %v319, %v319
        %v323 = vmul.f32 %v282, %v319
        %v324 = vmul.f32 %v285, %v321
        %v325 = vadd.f32 %v316, %v323
        %v326 = vadd.f32 %v317, %v324
        %s327 = scalar_lea.vmem [#allocation5], 160
        %v328 = vld [vmem:[%s327] sm:$0xff]
        %v330 = vcombine.high %v328, %v328
        %v332 = vmul.f32 %v291, %v328
        %v333 = vmul.f32 %v294, %v330
        %v334 = vadd.f32 %v325, %v332
        %v335 = vadd.f32 %v326, %v333
        %338 = vrot.lane.b32.xlu0 %v334, 2
        %v339 = vpop.permute.xlu0 %338
        %340 = vrot.lane.b32.xlu0 %v335, 2
        %v341 = vpop.permute.xlu0 %340
        %vm342 = vcmask 15360
        %v343 = vsel %vm342, %v339, %v341
        %v346 = vsel %vm342, 0.0, %v339
        %s347 = scalar_lea.vmem [#allocation5], 8
        %v348 = vld [vmem:[%s347] sm:$0xff]
        %v350 = vcombine.high %v348, %v348
        %v352 = vmul.f32 %v267, %v348
        %v353 = vmul.f32 %v264, %v350
        %s354 = scalar_lea.vmem [#allocation5], 48
        %v355 = vld [vmem:[%s354] sm:$0xff]
        %v357 = vcombine.high %v355, %v355
        %v359 = vmul.f32 %v276, %v355
        %v360 = vmul.f32 %v273, %v357
        %v361 = vadd.f32 %v352, %v359
        %v362 = vadd.f32 %v353, %v360
        %s363 = scalar_lea.vmem [#allocation5], 88
        %v364 = vld [vmem:[%s363] sm:$0xff]
        %v365 = vmul.f32 %v256, %v364
        %v367 = vcombine.high %v365, %v365
        %v369 = vadd.f32 %v361, %v365
        %v370 = vadd.f32 %v362, %v367
        %s371 = scalar_lea.vmem [#allocation5], 128
        %v372 = vld [vmem:[%s371] sm:$0xff]
        %v374 = vcombine.high %v372, %v372
        %v376 = vmul.f32 %v282, %v372
        %v377 = vmul.f32 %v285, %v374
        %v378 = vadd.f32 %v369, %v376
        %v379 = vadd.f32 %v370, %v377
        %s380 = scalar_lea.vmem [#allocation5], 168
        %v381 = vld [vmem:[%s380] sm:$0xff]
        %v383 = vcombine.high %v381, %v381
        %v385 = vmul.f32 %v291, %v381
        %v386 = vmul.f32 %v294, %v383
        %v387 = vadd.f32 %v378, %v385
        %v388 = vadd.f32 %v379, %v386
        %391 = vrot.lane.b32.xlu0 %v387, 1
        %v392 = vpop.permute.xlu0 %391
        %393 = vrot.lane.b32.xlu0 %v388, 1
        %v394 = vpop.permute.xlu0 %393
        %vm395 = vcmask 7168
        %v396 = vsel %vm395, %v392, %v394
        %v399 = vsel %vm395, 0.0, %v392
        %v400 = vadd.f32 %v346, %v399
        %v401 = vadd.f32 %v343, %v396
        %s402 = scalar_lea.vmem [#allocation5], 16
        %v403 = vld [vmem:[%s402] sm:$0xff]
        %v405 = vcombine.high %v403, %v403
        %v407 = vmul.f32 %v267, %v403
        %v408 = vmul.f32 %v264, %v405
        %s409 = scalar_lea.vmem [#allocation5], 56
        %v410 = vld [vmem:[%s409] sm:$0xff]
        %v412 = vcombine.high %v410, %v410
        %v414 = vmul.f32 %v276, %v410
        %v415 = vmul.f32 %v273, %v412
        %v416 = vadd.f32 %v407, %v414
        %v417 = vadd.f32 %v408, %v415
        %s418 = scalar_lea.vmem [#allocation5], 96
        %v419 = vld [vmem:[%s418] sm:$0xff]
        %v420 = vmul.f32 %v256, %v419
        %v422 = vcombine.high %v420, %v420
        %v424 = vadd.f32 %v416, %v420
        %v425 = vadd.f32 %v417, %v422
        %s426 = scalar_lea.vmem [#allocation5], 136
        %v427 = vld [vmem:[%s426] sm:$0xff]
        %v429 = vcombine.high %v427, %v427
        %v431 = vmul.f32 %v282, %v427
        %v432 = vmul.f32 %v285, %v429
        %v433 = vadd.f32 %v424, %v431
        %v434 = vadd.f32 %v425, %v432
        %s435 = scalar_lea.vmem [#allocation5], 176
        %v436 = vld [vmem:[%s435] sm:$0xff]
        %v438 = vcombine.high %v436, %v436
        %v440 = vmul.f32 %v291, %v436
        %v441 = vmul.f32 %v294, %v438
        %v442 = vadd.f32 %v433, %v440
        %v443 = vadd.f32 %v434, %v441
        %v444 = vadd.f32 %v400, %v442
        %v445 = vadd.f32 %v401, %v443
        %s446 = scalar_lea.vmem [#allocation5], 24
        %v447 = vld [vmem:[%s446] sm:$0xff]
        %v449 = vcombine.high %v447, %v447
        %v451 = vmul.f32 %v267, %v447
        %v452 = vmul.f32 %v264, %v449
        %s453 = scalar_lea.vmem [#allocation5], 64
        %v454 = vld [vmem:[%s453] sm:$0xff]
        %v456 = vcombine.high %v454, %v454
        %v458 = vmul.f32 %v276, %v454
        %v459 = vmul.f32 %v273, %v456
        %v460 = vadd.f32 %v451, %v458
        %v461 = vadd.f32 %v452, %v459
        %s462 = scalar_lea.vmem [#allocation5], 104
        %v463 = vld [vmem:[%s462] sm:$0xff]
        %v464 = vmul.f32 %v256, %v463
        %v466 = vcombine.high %v464, %v464
        %v468 = vadd.f32 %v460, %v464
        %v469 = vadd.f32 %v461, %v466
        %s470 = scalar_lea.vmem [#allocation5], 144
        %v471 = vld [vmem:[%s470] sm:$0xff]
        %v473 = vcombine.high %v471, %v471
        %v475 = vmul.f32 %v282, %v471
        %v476 = vmul.f32 %v285, %v473
        %v477 = vadd.f32 %v468, %v475
        %v478 = vadd.f32 %v469, %v476
        %s479 = scalar_lea.vmem [#allocation5], 184
        %v480 = vld [vmem:[%s479] sm:$0xff]
        %v482 = vcombine.high %v480, %v480
        %v484 = vmul.f32 %v291, %v480
        %v485 = vmul.f32 %v294, %v482
        %v486 = vadd.f32 %v477, %v484
        %v487 = vadd.f32 %v478, %v485
        %490 = vrot.lane.b32.xlu0 %v486, 127
        %v491 = vpop.permute.xlu0 %490
        %492 = vrot.lane.b32.xlu0 %v487, 127
        %v493 = vpop.permute.xlu0 %492
        %vm494 = vcmask 1039360
        %v495 = vsel %vm494, %v491, %v493
        %v498 = vsel %vm494, %v493, 0.0
        %v499 = vadd.f32 %v444, %v495
        %v500 = vadd.f32 %v445, %v498
        %s501 = scalar_lea.vmem [#allocation5], 32
        %v502 = vld [vmem:[%s501] sm:$0xff]
        %v504 = vcombine.high %v502, %v502
        %v506 = vmul.f32 %v267, %v502
        %v507 = vmul.f32 %v264, %v504
        %s508 = scalar_lea.vmem [#allocation5], 72
        %v509 = vld [vmem:[%s508] sm:$0xff]
        %v511 = vcombine.high %v509, %v509
        %v513 = vmul.f32 %v276, %v509
        %v514 = vmul.f32 %v273, %v511
        %v515 = vadd.f32 %v506, %v513
        %v516 = vadd.f32 %v507, %v514
        %s517 = scalar_lea.vmem [#allocation5], 112
        %v518 = vld [vmem:[%s517] sm:$0xff]
        %v519 = vmul.f32 %v256, %v518
        %v521 = vcombine.high %v519, %v519
        %v523 = vadd.f32 %v515, %v519
        %v524 = vadd.f32 %v516, %v521
        %s525 = scalar_lea.vmem [#allocation5], 152
        %v526 = vld [vmem:[%s525] sm:$0xff]
        %v528 = vcombine.high %v526, %v526
        %v530 = vmul.f32 %v282, %v526
        %v531 = vmul.f32 %v285, %v528
        %v532 = vadd.f32 %v523, %v530
        %v533 = vadd.f32 %v524, %v531
        %s534 = scalar_lea.vmem [#allocation5], 192
        %v535 = vld [vmem:[%s534] sm:$0xff]
        %v537 = vcombine.high %v535, %v535
        %v539 = vmul.f32 %v291, %v535
        %v540 = vmul.f32 %v294, %v537
        %v541 = vadd.f32 %v532, %v539
        %v542 = vadd.f32 %v533, %v540
        %545 = vrot.lane.b32.xlu0 %v541, 126
        %v546 = vpop.permute.xlu0 %545
        %547 = vrot.lane.b32.xlu0 %v542, 126
        %v548 = vpop.permute.xlu0 %547
        %vm549 = vcmask 1031168
        %v550 = vsel %vm549, %v546, %v548
        %v553 = vsel %vm549, %v548, 0.0
        %v554 = vadd.f32 %v499, %v550
        %v555 = vadd.f32 %v500, %v553
        %v556 = vld [vmem:[#allocation8] sm:$0xff]
        %v557 = vld [vmem:[#allocation8 + $0x8] sm:$0xff]
        %v558 = vld [vmem:[#allocation7] sm:$0xff]
        %v559 = vld [vmem:[#allocation7 + $0x8] sm:$0xff]
        %v560 = vlaneseq
        %v561 = vshrl.u32 %v560, 7
        %v562 = vsub.s32 0, %v561
        %v563 = vrot.slane %v554, %v562
        %v564 = vlaneseq
        %v565 = vshrl.u32 %v564, 7
        %v566 = vsub.s32 0, %v565
        %v567 = vrot.slane %v555, %v566
        %v568 = vmul.f32 %v558, %v563
        %v569 = vmul.f32 %v559, %v567
        %v570 = vadd.f32 %v556, %v568
        %v571 = vadd.f32 %v557, %v569
        %s572 = scalar_lea.vmem [#allocation7], 16
        %v573 = vld [vmem:[%s572] sm:$0xff]
        %v574 = vld [vmem:[%s572 + $0x8] sm:$0xff]
        %v575 = vlaneseq
        %v576 = vshrl.u32 %v575, 7
        %v577 = vsub.s32 1, %v576
        %v578 = vrot.slane %v554, %v577
        %v579 = vlaneseq
        %v580 = vshrl.u32 %v579, 7
        %v581 = vsub.s32 1, %v580
        %v582 = vrot.slane %v555, %v581
        %v583 = vmul.f32 %v573, %v578
        %v584 = vmul.f32 %v574, %v582
        %v585 = vadd.f32 %v570, %v583
        %v586 = vadd.f32 %v571, %v584
        %s587 = scalar_lea.vmem [#allocation7], 32
        %v588 = vld [vmem:[%s587] sm:$0xff]
        %v589 = vld [vmem:[%s587 + $0x8] sm:$0xff]
        %v590 = vlaneseq
        %v591 = vshrl.u32 %v590, 7
        %v592 = vsub.s32 2, %v591
        %v593 = vrot.slane %v554, %v592
        %v594 = vlaneseq
        %v595 = vshrl.u32 %v594, 7
        %v596 = vsub.s32 2, %v595
        %v597 = vrot.slane %v555, %v596
        %v598 = vmul.f32 %v588, %v593
        %v599 = vmul.f32 %v589, %v597
        %v600 = vadd.f32 %v585, %v598
        %v601 = vadd.f32 %v586, %v599
        %s602 = scalar_lea.vmem [#allocation7], 48
        %v603 = vld [vmem:[%s602] sm:$0xff]
        %v604 = vld [vmem:[%s602 + $0x8] sm:$0xff]
        %v605 = vlaneseq
        %v606 = vshrl.u32 %v605, 7
        %v607 = vsub.s32 3, %v606
        %v608 = vrot.slane %v554, %v607
        %v609 = vlaneseq
        %v610 = vshrl.u32 %v609, 7
        %v611 = vsub.s32 3, %v610
        %v612 = vrot.slane %v555, %v611
        %v613 = vmul.f32 %v603, %v608
        %v614 = vmul.f32 %v604, %v612
        %v615 = vadd.f32 %v600, %v613
        %v616 = vadd.f32 %v601, %v614
        %v617 = vmax.f32 %v615, 0.0
        %v618 = vmax.f32 %v616, 0.0
        %619 = vst [vmem:[%s255] sm:$0xff] %v617
        %620 = vst [vmem:[%s255 + $0x8] sm:$0xff] %v618
        %s621 = sand.u32 %s120, 1
        %s622 = scalar_lea.sflag [#allocation4], %s621
        %s623 = sand.u32 %s120, 1
        %s624 = smul.addr %s623, 16
        %s625 = scalar_lea.vmem [#allocation10], %s624
        // Predicated region
        $region53: #{tpu_custom_call.1} parent=35 // pred_check
          %p626 = pneg %p130
        $region54: #{tpu_custom_call.1} parent=35 // pred_check_branch
          %628 = sbr.rel (%p626) target = $region56
        $region55: #{tpu_custom_call.1} parent=35 // pred_region
          %s630 = ssub.s32 256, 256
          %631 = vsyncadd %s622, %s630
          %s632 = smul.addr %s23, 2
          %s633 = smul.addr %s632, 128
          %s634 = scalar_lea.hbm %s4, %s633
          %s636 = sshll.u32 %s625, 4
          %s637 = int_to_ptr.vmem [resolvable:$true] %s636
          %639 = dma.vmem_to_hbm [thread:$0]  %s637, 256, %s634, %s622
        $region56: #{tpu_custom_call.1} parent=35 // pred_fallthru
          _
      $region36: #{tpu_custom_call.1} parent=5 // pred_fallthru
        _
      %p640 = scmp.le.s32.totalorder 2, %s18
      // Predicated region
      $region57: #{tpu_custom_call.1} parent=5 // pred_check
        %p641 = pneg %p640
      $region58: #{tpu_custom_call.1} parent=5 // pred_check_branch
        %643 = sbr.rel (%p641) target = $region60
      $region59: #{tpu_custom_call.1} parent=5 // pred_region
        %s644 = ssub.s32 %s18, 2
        // Predicated region
        $region61: #{tpu_custom_call.1} parent=59 // pred_check
          %p645 = pneg %p136
        $region62: #{tpu_custom_call.1} parent=59 // pred_check_branch
          %647 = sbr.rel (%p645) target = $region64
        $region63: #{tpu_custom_call.1} parent=59 // pred_region
          %s648 = sand.u32 %s121, 1
          %s649 = scalar_lea.sflag [#allocation4], %s648
          %s650 = sand.u32 %s121, 1
          %s651 = smul.addr %s650, 16
          %s652 = scalar_lea.vmem [#allocation10], %s651
          %653 = dma.done %s649, 256
        $region64: #{tpu_custom_call.1} parent=59 // pred_fallthru
          _
      $region60: #{tpu_custom_call.1} parent=5 // pred_fallthru
        _
    $region6: #{tpu_custom_call.1} parent=1 // loop_footer
      %s22 = sadd.s32 1, %s18
    $region7: #{tpu_custom_call.1} parent=1 // loop_footer_branch
      %17 = sbr.rel target = $region3
    $region8: #{tpu_custom_call.1} parent=1 // loop_exit
      _
    %654 = vsyncpa [#allocation3], 1
    %s655 = scalar_lea.sflag [#allocation3], 1
    %656 = vsyncpa %s655, 1
    %657 = vsyncpa [#allocation6], 1
    %658 = vsyncpa [#allocation9], 1
    %659 = vsyncpa [#allocation4], 1
    %s660 = scalar_lea.sflag [#allocation4], 1
    %661 = vsyncpa %s660, 1

</llo_original>
